<compile_context>
chip_gen: v7x
topology: tpu7x:2x2x1
jax: 0.10.0
libtpu: 0.0.40
codegen_flags: <defaults>
</compile_context>

<pallas_src>
import functools

import jax
import jax.numpy as jnp
from jax import lax
from jax.experimental import pallas as pl
from jax.experimental.pallas import tpu as pltpu


def _round_up(x, m):
    return ((x + m - 1) // m) * m


# ---------------------------------------------------------------------------
# Kernel
# ---------------------------------------------------------------------------
def actor_critic_fused_kernel(x_ref, w1_ref, b1_ref, w2_ref, b2_ref, out_ref,
                              *, num_actions):
    x = x_ref[...]                                              # (TB, num_inputs)

    # Fused layer 1: [critic_h || actor_h || zero-pad]  -> (TB, F)
    h = jnp.dot(x, w1_ref[...], preferred_element_type=jnp.float32) + b1_ref[...]
    h = jnp.maximum(h, 0.0)                                     # ReLU

    # Fused (block-diagonal) layer 2: col 0 = value, cols 1..A = actor logits
    y = jnp.dot(h, w2_ref[...], preferred_element_type=jnp.float32) + b2_ref[...]
    # y: (TB, O)

    # Masked, numerically-stable softmax over the logit columns only.
    col = lax.broadcasted_iota(jnp.int32, y.shape, dimension=1)
    is_logit = (col >= 1) & (col <= num_actions)
    masked = jnp.where(is_logit, y, -jnp.inf)
    m = jnp.max(masked, axis=-1, keepdims=True)
    e = jnp.exp(masked - m)                                     # 0 outside logits
    denom = jnp.sum(e, axis=-1, keepdims=True)
    policy = e * pl.reciprocal(denom, approx=True)              # EUP vrcp

    # Column 0 keeps the raw value; logit columns get the policy; pad cols -> 0.
    out_ref[...] = jnp.where(col == 0, y, policy)


# ---------------------------------------------------------------------------
# Parameter packing (fuse + lane-pad)
# ---------------------------------------------------------------------------
def pack_params(params, num_actions):
    """Pack the 8 Linear params into fused, 128-lane-padded (W1, b1, W2, b2)."""
    cw1, cb1, cw2, cb2, aw1, ab1, aw2, ab2 = params
    num_inputs, hidden = cw1.shape
    F = _round_up(2 * hidden, 128)          # fused hidden width (lane-padded)
    O = _round_up(1 + num_actions, 128)     # fused output width (lane-padded)

    w1 = jnp.zeros((num_inputs, F), jnp.float32)
    w1 = w1.at[:, :hidden].set(cw1).at[:, hidden:2 * hidden].set(aw1)
    b1 = jnp.zeros((1, F), jnp.float32)
    b1 = b1.at[:, :hidden].set(cb1).at[:, hidden:2 * hidden].set(ab1)

    w2 = jnp.zeros((F, O), jnp.float32)
    w2 = w2.at[:hidden, 0:1].set(cw2)
    w2 = w2.at[hidden:2 * hidden, 1:1 + num_actions].set(aw2)
    b2 = jnp.zeros((1, O), jnp.float32)
    b2 = b2.at[:, 0:1].set(cb2).at[:, 1:1 + num_actions].set(ab2)
    return w1, b1, w2, b2


# ---------------------------------------------------------------------------
# Wrappers
# ---------------------------------------------------------------------------
def actor_critic_forward_batched(states, packed, num_actions):
    """states: (B, num_inputs) f32 -> (value (B,1), policy (B,num_actions))."""
    x = jnp.asarray(states, jnp.float32)
    B, num_inputs = x.shape
    w1, b1, w2, b2 = packed
    F = w1.shape[1]
    O = w2.shape[1]

    # Batch tile: 128 rows (MXU-aligned) when the batch allows, else pad to 8.
    TB = 128 if B >= 128 else _round_up(B, 8)
    B_pad = _round_up(B, TB)
    if B_pad != B:
        x = jnp.pad(x, ((0, B_pad - B), (0, 0)))
    nb = B_pad // TB

    kernel = functools.partial(actor_critic_fused_kernel, num_actions=num_actions)

    out = pl.pallas_call(
        kernel,
        out_shape=jax.ShapeDtypeStruct((B_pad, O), jnp.float32),
        grid=(nb,),
        in_specs=[
            pl.BlockSpec((TB, num_inputs), lambda i: (i, 0)),      # x tile
            pl.BlockSpec((num_inputs, F), lambda i: (0, 0)),       # fused W1 (resident)
            pl.BlockSpec((1, F), lambda i: (0, 0)),                # fused b1
            pl.BlockSpec((F, O), lambda i: (0, 0)),                # fused W2 (resident)
            pl.BlockSpec((1, O), lambda i: (0, 0)),                # fused b2
        ],
        out_specs=pl.BlockSpec((TB, O), lambda i: (i, 0)),
        compiler_params=pltpu.CompilerParams(
            dimension_semantics=("parallel",),
        ),
    )(x, w1, b1, w2, b2)

    value = out[:B, 0:1]
    policy = out[:B, 1:1 + num_actions]
    return value, policy


def actor_critic_forward(state, packed, num_actions):
    """Single state (num_inputs,) -> (value (1,1), policy (1,num_actions)).

    Matches the PyTorch module's forward (unsqueeze(0) -> batch of 1)."""
    x = jnp.asarray(state, jnp.float32).reshape(1, -1)
    return actor_critic_forward_batched(x, packed, num_actions)


# ---------------------------------------------------------------------------
# Init (PyTorch-Linear-like uniform bounds; weights stored (in, out))
# ---------------------------------------------------------------------------
def init_params(key, num_inputs, num_actions, hidden_size):
    ks = jax.random.split(key, 8)

    def linear(kw, kb, fan_in, fan_out):
        bound = 1.0 / jnp.sqrt(float(fan_in))
        w = jax.random.uniform(kw, (fan_in, fan_out), jnp.float32, -bound, bound)
        b = jax.random.uniform(kb, (1, fan_out), jnp.float32, -bound, bound)
        return w, b

    cw1, cb1 = linear(ks[0], ks[1], num_inputs, hidden_size)
    cw2, cb2 = linear(ks[2], ks[3], hidden_size, 1)
    aw1, ab1 = linear(ks[4], ks[5], num_inputs, hidden_size)
    aw2, ab2 = linear(ks[6], ks[7], hidden_size, num_actions)
    return (cw1, cb1, cw2, cb2, aw1, ab1, aw2, ab2)


if __name__ == "__main__":
    num_inputs, num_actions, hidden_size = 16, 8, 32

    key = jax.random.PRNGKey(0)
    k_params, k_state, k_batch = jax.random.split(key, 3)
    params = init_params(k_params, num_inputs, num_actions, hidden_size)
    packed = pack_params(params, num_actions)

    # ---- single-state path (original module semantics) ----
    state = jax.random.normal(k_state, (num_inputs,), jnp.float32)
    fwd_single = jax.jit(functools.partial(actor_critic_forward,
                                           num_actions=num_actions))
    value, policy = fwd_single(state, packed)

    # ---- batched path (perf-oriented) ----
    B = 256
    states = jax.random.normal(k_batch, (B, num_inputs), jnp.float32)
    fwd_batched = jax.jit(functools.partial(actor_critic_forward_batched,
                                            num_actions=num_actions))
    vb, pb = fwd_batched(states, packed)

    jax.block_until_ready((value, policy, vb, pb))

    # ---- reference check in plain JAX ----
    cw1, cb1, cw2, cb2, aw1, ab1, aw2, ab2 = params

    def ref(x):
        v = jnp.maximum(x @ cw1 + cb1, 0.0) @ cw2 + cb2
        logits = jnp.maximum(x @ aw1 + ab1, 0.0) @ aw2 + ab2
        return v, jax.nn.softmax(logits, axis=1)

    v1, p1 = ref(state.reshape(1, -1))
    assert value.shape == (1, 1) and policy.shape == (1, num_actions)
    assert abs(float(jnp.sum(policy)) - 1.0) < 2e-3
    assert jnp.allclose(value, v1, atol=1e-4)
    assert jnp.allclose(policy, p1, atol=2e-3)   # approx reciprocal (EUP) tolerance

    vB, pB = ref(states)
    assert vb.shape == (B, 1) and pb.shape == (B, num_actions)
    assert jnp.allclose(vb, vB, atol=1e-4)
    assert jnp.allclose(pb, pB, atol=2e-3)

    print("KERNEL_OK")
</pallas_src>

<mosaic_0001>
module attributes {stable_mosaic.version = 11 : i64} {
  func.func @actor_critic_fused_kernel(%arg0: i32, %arg1: memref<8x16xf32, #tpu.memory_space<vmem>>, %arg2: memref<16x128xf32, #tpu.memory_space<vmem>>, %arg3: memref<1x128xf32, #tpu.memory_space<vmem>>, %arg4: memref<128x128xf32, #tpu.memory_space<vmem>>, %arg5: memref<1x128xf32, #tpu.memory_space<vmem>>, %arg6: memref<8x128xf32, #tpu.memory_space<vmem>>) attributes {dimension_semantics = [#tpu.dimension_semantics<parallel>], iteration_bounds = array<i64: 1>, scalar_prefetch = 0 : i64, scratch_operands = 0 : i64, tpu.core_type = #tpu.core_type<tc>, window_params = [{transform_indices = @transform_0, window_bounds = array<i64: 8, 16>}, {pipeline_mode = #tpu.pipeline_mode<synchronous>, transform_indices = @transform_1, window_bounds = array<i64: 16, 128>}, {pipeline_mode = #tpu.pipeline_mode<synchronous>, transform_indices = @transform_2, window_bounds = array<i64: 1, 128>}, {pipeline_mode = #tpu.pipeline_mode<synchronous>, transform_indices = @transform_3, window_bounds = array<i64: 128, 128>}, {pipeline_mode = #tpu.pipeline_mode<synchronous>, transform_indices = @transform_4, window_bounds = array<i64: 1, 128>}, {transform_indices = @transform_5, window_bounds = array<i64: 8, 128>}]} {
    %c0 = arith.constant 0 : index
    %c0_0 = arith.constant 0 : index
    %0 = vector.load %arg1[%c0, %c0_0] : memref<8x16xf32, #tpu.memory_space<vmem>>, vector<8x16xf32>
    %c0_1 = arith.constant 0 : index
    %c0_2 = arith.constant 0 : index
    %1 = vector.load %arg2[%c0_1, %c0_2] : memref<16x128xf32, #tpu.memory_space<vmem>>, vector<16x128xf32>
    %cst = arith.constant dense<0.000000e+00> : vector<8x128xf32>
    %2 = tpu.matmul %0, %1, %cst {dimension_numbers = #tpu.dot_dimension_numbers<[1], [0], [0], [1], [0, 0, 1, 1], [], []>} : vector<8x16xf32>, vector<16x128xf32>, vector<8x128xf32> -> vector<8x128xf32>
    %c0_3 = arith.constant 0 : index
    %c0_4 = arith.constant 0 : index
    %3 = vector.load %arg3[%c0_3, %c0_4] : memref<1x128xf32, #tpu.memory_space<vmem>>, vector<1x128xf32>
    %4 = vector.broadcast %3 : vector<1x128xf32> to vector<8x128xf32>
    %5 = arith.addf %2, %4 : vector<8x128xf32>
    %cst_5 = arith.constant 0.000000e+00 : f32
    %6 = vector.broadcast %cst_5 : f32 to vector<8x128xf32>
    %7 = arith.maximumf %5, %6 : vector<8x128xf32>
    %c0_6 = arith.constant 0 : index
    %c0_7 = arith.constant 0 : index
    %8 = vector.load %arg4[%c0_6, %c0_7] : memref<128x128xf32, #tpu.memory_space<vmem>>, vector<128x128xf32>
    %cst_8 = arith.constant dense<0.000000e+00> : vector<8x128xf32>
    %9 = tpu.matmul %7, %8, %cst_8 {dimension_numbers = #tpu.dot_dimension_numbers<[1], [0], [0], [1], [0, 0, 1, 1], [], []>} : vector<8x128xf32>, vector<128x128xf32>, vector<8x128xf32> -> vector<8x128xf32>
    %c0_9 = arith.constant 0 : index
    %c0_10 = arith.constant 0 : index
    %10 = vector.load %arg5[%c0_9, %c0_10] : memref<1x128xf32, #tpu.memory_space<vmem>>, vector<1x128xf32>
    %11 = vector.broadcast %10 : vector<1x128xf32> to vector<8x128xf32>
    %12 = arith.addf %9, %11 : vector<8x128xf32>
    %13 = tpu.iota {dimensions = array<i32: 1>} : vector<8x128xi32>
    %c1_i32 = arith.constant 1 : i32
    %14 = vector.broadcast %c1_i32 : i32 to vector<8x128xi32>
    %15 = arith.cmpi sge, %13, %14 : vector<8x128xi32>
    %c8_i32 = arith.constant 8 : i32
    %16 = vector.broadcast %c8_i32 : i32 to vector<8x128xi32>
    %17 = arith.cmpi sle, %13, %16 : vector<8x128xi32>
    %18 = arith.andi %15, %17 : vector<8x128xi1>
    %cst_11 = arith.constant 0xFF800000 : f32
    %19 = vector.broadcast %cst_11 : f32 to vector<8x128xf32>
    %20 = arith.select %18, %12, %19 : vector<8x128xi1>, vector<8x128xf32>
    %cst_12 = arith.constant dense<0xFF800000> : vector<8xf32>
    %21 = vector.multi_reduction <maximumf>, %20, %cst_12 [1] : vector<8x128xf32> to vector<8xf32>
    %22 = vector.shape_cast %21 : vector<8xf32> to vector<8x1xf32>
    %23 = vector.broadcast %22 : vector<8x1xf32> to vector<8x128xf32>
    %24 = arith.subf %20, %23 : vector<8x128xf32>
    %25 = math.exp %24 : vector<8x128xf32>
    %cst_13 = arith.constant dense<0.000000e+00> : vector<8xf32>
    %26 = vector.multi_reduction <add>, %25, %cst_13 [1] : vector<8x128xf32> to vector<8xf32>
    %27 = vector.shape_cast %26 : vector<8xf32> to vector<8x1xf32>
    %28 = tpu.reciprocal %27 {approx = true} : vector<8x1xf32> -> vector<8x1xf32>
    %29 = vector.broadcast %28 : vector<8x1xf32> to vector<8x128xf32>
    %30 = arith.mulf %25, %29 : vector<8x128xf32>
    %c0_i32 = arith.constant 0 : i32
    %31 = vector.broadcast %c0_i32 : i32 to vector<8x128xi32>
    %32 = arith.cmpi eq, %13, %31 : vector<8x128xi32>
    %33 = arith.select %32, %12, %30 : vector<8x128xi1>, vector<8x128xf32>
    %c0_14 = arith.constant 0 : index
    %c0_15 = arith.constant 0 : index
    %34 = vector.load %arg6[%c0_14, %c0_15] : memref<8x128xf32, #tpu.memory_space<vmem>>, vector<8x128xf32>
    tpu.vector_store %arg6[%c0_14, %c0_15], %33 {strides = array<i32>} : memref<8x128xf32, #tpu.memory_space<vmem>>, vector<8x128xf32>,
    return
  }
  func.func @transform_0(%arg0: i32) -> (i32, i32) {
    %c0_i32 = arith.constant 0 : i32
    %c0_i32_0 = arith.constant 0 : i32
    return %arg0, %c0_i32 : i32, i32
  }
  func.func @transform_1(%arg0: i32) -> (i32, i32) {
    %c0_i32 = arith.constant 0 : i32
    %c0_i32_0 = arith.constant 0 : i32
    %c0_i32_1 = arith.constant 0 : i32
    return %c0_i32, %c0_i32_0 : i32, i32
  }
  func.func @transform_2(%arg0: i32) -> (i32, i32) {
    %c0_i32 = arith.constant 0 : i32
    %c0_i32_0 = arith.constant 0 : i32
    %c0_i32_1 = arith.constant 0 : i32
    return %c0_i32, %c0_i32_0 : i32, i32
  }
  func.func @transform_3(%arg0: i32) -> (i32, i32) {
    %c0_i32 = arith.constant 0 : i32
    %c0_i32_0 = arith.constant 0 : i32
    %c0_i32_1 = arith.constant 0 : i32
    return %c0_i32, %c0_i32_0 : i32, i32
  }
  func.func @transform_4(%arg0: i32) -> (i32, i32) {
    %c0_i32 = arith.constant 0 : i32
    %c0_i32_0 = arith.constant 0 : i32
    %c0_i32_1 = arith.constant 0 : i32
    return %c0_i32, %c0_i32_0 : i32, i32
  }
  func.func @transform_5(%arg0: i32) -> (i32, i32) {
    %c0_i32 = arith.constant 0 : i32
    %c0_i32_0 = arith.constant 0 : i32
    return %arg0, %c0_i32 : i32, i32
  }
}

</mosaic_0001>

<llo_original>
// kernel: actor_critic_forward.1
$region0: #{actor_critic_forward.1}
  #allocation0 [shape = 'u32[]', space=smem, size = 0x4, offset = 0x4, fixed_abs, tag = 'smem constant byte address 0x4 - core index']
  #allocation1 [shape = 'u32[144,128]{1,0:T(1,128)}', space=vmem, size = 0x12000, scoped, tag = 'internal scratch']
  %s0 = inlined_call_operand.vmem [shape: f32[8,16], index: 0, kind: input, shape index: {}]
  %s1 = inlined_call_operand.vmem [shape: f32[16,128], index: 1, kind: input, shape index: {}]
  %s2 = inlined_call_operand.vmem [shape: f32[1,128], index: 2, kind: input, shape index: {}]
  %s3 = inlined_call_operand.hbm [shape: f32[128,128], index: 3, kind: input, shape index: {}]
  %s4 = inlined_call_operand.vmem [shape: f32[1,128], index: 4, kind: input, shape index: {}]
  %s5 = inlined_call_operand.vmem [shape: f32[8,128], index: 5, kind: output, shape index: {}]
  %s6 = sld [smem:[#allocation0]]
  $region34: #{actor_critic_forward.1} parent=0
    _
  %s8 = ssub.s32 1, %s6
  %s9 = scalar_select 0, %s8, %s6
  $region1: #{actor_critic_forward.1} parent=0
    #allocation2 [shape = 'u8[65536]{0}', space=vmem, size = 0x10000, scoped, tag = 'input window, operand 3, single buffered']
    #allocation3 [shape = 's32[1]{0}', space=sflag, size = 0x4, scoped, tag = 'scoped memory for actor_critic_forward.1']
    %10 = vsyncpa [#allocation3], 0
    // Predicated region
    $region2: #{actor_critic_forward.1} parent=1 // pred_check
      _
    $region3: #{actor_critic_forward.1} parent=1 // pred_check_branch
      %12 = sbr.rel (0) target = $region5
    $region4: #{actor_critic_forward.1} parent=1 // pred_region
      _
    $region5: #{actor_critic_forward.1} parent=1 // pred_fallthru
      _
    // Predicated region
    $region6: #{actor_critic_forward.1} parent=1 // pred_check
      _
    $region7: #{actor_critic_forward.1} parent=1 // pred_check_branch
      %14 = sbr.rel (0) target = $region9
    $region8: #{actor_critic_forward.1} parent=1 // pred_region
      _
    $region9: #{actor_critic_forward.1} parent=1 // pred_fallthru
      _
    // Predicated region
    $region10: #{actor_critic_forward.1} parent=1 // pred_check
      _
    $region11: #{actor_critic_forward.1} parent=1 // pred_check_branch
      %16 = sbr.rel (0) target = $region13
    $region12: #{actor_critic_forward.1} parent=1 // pred_region
      _
    $region13: #{actor_critic_forward.1} parent=1 // pred_fallthru
      _
    // Predicated region
    $region14: #{actor_critic_forward.1} parent=1 // pred_check
      _
    $region15: #{actor_critic_forward.1} parent=1 // pred_check_branch
      %18 = sbr.rel (0) target = $region17
    $region16: #{actor_critic_forward.1} parent=1 // pred_region
      %s20 = ssub.s32 2048, 2048
      %21 = vsyncadd [#allocation3], %s20
      %s22 = sshll.u32 [#allocation2], 4
      %s23 = int_to_ptr.vmem [resolvable:$true] %s22
      %28 = dma.hbm_to_vmem [thread:$0]  %s3, 2048, %s23, [#allocation3], 128, 128, 8
    $region17: #{actor_critic_forward.1} parent=1 // pred_fallthru
      _
    // Predicated region
    $region18: #{actor_critic_forward.1} parent=1 // pred_check
      _
    $region19: #{actor_critic_forward.1} parent=1 // pred_check_branch
      %30 = sbr.rel (0) target = $region21
    $region20: #{actor_critic_forward.1} parent=1 // pred_region
      _
    $region21: #{actor_critic_forward.1} parent=1 // pred_fallthru
      _
    // Predicated region
    $region22: #{actor_critic_forward.1} parent=1 // pred_check
      _
    $region23: #{actor_critic_forward.1} parent=1 // pred_check_branch
      %32 = sbr.rel (0) target = $region25
    $region24: #{actor_critic_forward.1} parent=1 // pred_region
      %33 = dma.done [#allocation3], 2048
    $region25: #{actor_critic_forward.1} parent=1 // pred_fallthru
      _
    %v34 = vld [vmem:[%s0] sm:$0xff]
    %v35 = vld [vmem:[%s1] sm:$0xff]
    %v36 = vld [vmem:[%s1 + $0x8] sm:$0xff]
    %v37 = vld [vmem:[%s2] sm:$0x1]
    %v39 = vlaneseq
    %v40 = vshrl.u32 %v39, 7
    %v41 = vsub.s32 0, %v40
    %v42 = vrot.slane %v37, %v41
    %vm44 = vcmask 130048
    %v46 = vsel %vm44, %v34, 0
    %48 = vmatprep.subr.mxu0 0.0
    %49 = vmatpush1.msra.mxu0 %v35
    %50 = vmatprep.subr.mxu0 0.0
    %51 = vmatpush1.msra.mxu0 %v36
    %52 = vmatprep.subr.mxu0 0.0
    %53 = vmatpush1.msra.mxu0 0.0
    %54 = vmatprep.subr.mxu0 0.0
    %55 = vmatpush1.msra.mxu0 0.0
    %56 = vmatprep.subr.mxu0 0.0
    %57 = vmatpush1.msra.mxu0 0.0
    %58 = vmatprep.subr.mxu0 0.0
    %59 = vmatpush1.msra.mxu0 0.0
    %60 = vmatprep.subr.mxu0 0.0
    %61 = vmatpush1.msra.mxu0 0.0
    %62 = vmatprep.subr.mxu0 0.0
    %63 = vmatpush1.msra.mxu0 0.0
    %64 = vmatprep.subr.mxu0 0.0
    %65 = vmatpush1.msra.mxu0 0.0
    %66 = vmatprep.subr.mxu0 0.0
    %67 = vmatpush1.msra.mxu0 0.0
    %68 = vmatprep.subr.mxu0 0.0
    %69 = vmatpush1.msra.mxu0 0.0
    %70 = vmatprep.subr.mxu0 0.0
    %71 = vmatpush1.msra.mxu0 0.0
    %72 = vmatprep.subr.mxu0 0.0
    %73 = vmatpush1.msra.mxu0 0.0
    %74 = vmatprep.subr.mxu0 0.0
    %75 = vmatpush1.msra.mxu0 0.0
    %76 = vmatprep.subr.mxu0 0.0
    %77 = vmatpush1.msra.mxu0 0.0
    %78 = vmatprep.subr.mxu0 0.0
    %79 = vmatpush1.msra.mxu0 0.0
    %80 = vmatprep.subr.mxu0 0.0
    %81 = vmatpush1.msra.mxu0 0.0
    %82 = vmatprep.subr.mxu0 0.0
    %83 = vmatpush1.msra.mxu0 0.0
    %84 = vmatprep.subr.mxu0 0.0
    %85 = vmatpush1.msra.mxu0 0.0
    %86 = vmatprep.subr.mxu0 0.0
    %87 = vmatpush1.msra.mxu0 0.0
    %88 = vmatprep.subr.mxu0 0.0
    %89 = vmatpush1.msra.mxu0 0.0
    %90 = vmatprep.subr.mxu0 0.0
    %91 = vmatpush1.msra.mxu0 0.0
    %92 = vmatprep.subr.mxu0 0.0
    %93 = vmatpush1.msra.mxu0 0.0
    %94 = vmatprep.subr.mxu0 0.0
    %95 = vmatpush1.msra.mxu0 0.0
    %96 = vmatprep.subr.mxu0 0.0
    %97 = vmatpush1.msra.mxu0 0.0
    %98 = vmatprep.subr.mxu0 0.0
    %99 = vmatpush1.msra.mxu0 0.0
    %100 = vmatprep.subr.mxu0 0.0
    %101 = vmatpush1.msra.mxu0 0.0
    %102 = vmatprep.subr.mxu0 0.0
    %103 = vmatpush1.msra.mxu0 0.0
    %104 = vmatprep.subr.mxu0 0.0
    %105 = vmatpush1.msra.mxu0 0.0
    %106 = vmatprep.subr.mxu0 0.0
    %107 = vmatpush1.msra.mxu0 0.0
    %108 = vmatprep.subr.mxu0 0.0
    %109 = vmatpush1.msra.mxu0 0.0
    %110 = vmatprep.subr.mxu0 0.0
    %111 = vmatpush1.msra.mxu0 0.0
    %112 = vmatprep.mubr.f32.mxu0 0.0
    %113 = vmatmul.mubr.f32.gmra.mrb[0].mxu0 %v46
    %v114 = vpop.f32.mrb[0].mxu0
    %v115 = vadd.f32 %v42, %v114
    %v116 = vpop.f32.mrb[0].mxu0
    %117 = vdwg.mxu0
    %v118 = vmax.f32 %v115, 0.0
    %v119 = vld [vmem:[#allocation2] sm:$0xff]
    %v120 = vld [vmem:[#allocation2 + $0x8] sm:$0xff]
    %v121 = vld [vmem:[#allocation2 + $0x10] sm:$0xff]
    %v122 = vld [vmem:[#allocation2 + $0x18] sm:$0xff]
    %v123 = vld [vmem:[#allocation2 + $0x20] sm:$0xff]
    %v124 = vld [vmem:[#allocation2 + $0x28] sm:$0xff]
    %v125 = vld [vmem:[#allocation2 + $0x30] sm:$0xff]
    %v126 = vld [vmem:[#allocation2 + $0x38] sm:$0xff]
    %v127 = vld [vmem:[#allocation2 + $0x40] sm:$0xff]
    %v128 = vld [vmem:[#allocation2 + $0x48] sm:$0xff]
    %v129 = vld [vmem:[#allocation2 + $0x50] sm:$0xff]
    %v130 = vld [vmem:[#allocation2 + $0x58] sm:$0xff]
    %v131 = vld [vmem:[#allocation2 + $0x60] sm:$0xff]
    %v132 = vld [vmem:[#allocation2 + $0x68] sm:$0xff]
    %v133 = vld [vmem:[#allocation2 + $0x70] sm:$0xff]
    %v134 = vld [vmem:[#allocation2 + $0x78] sm:$0xff]
    %v135 = vld [vmem:[%s4] sm:$0x1]
    %v137 = vlaneseq
    %v138 = vshrl.u32 %v137, 7
    %v139 = vsub.s32 0, %v138
    %v140 = vrot.slane %v135, %v139
    %142 = vmatprep.subr.mxu0 0.0
    %143 = vmatpush1.msra.mxu0 %v119
    %144 = vmatprep.subr.mxu0 0.0
    %145 = vmatpush1.msra.mxu0 %v120
    %146 = vmatprep.subr.mxu0 0.0
    %147 = vmatpush1.msra.mxu0 %v121
    %148 = vmatprep.subr.mxu0 0.0
    %149 = vmatpush1.msra.mxu0 %v122
    %150 = vmatprep.subr.mxu0 0.0
    %151 = vmatpush1.msra.mxu0 %v123
    %152 = vmatprep.subr.mxu0 0.0
    %153 = vmatpush1.msra.mxu0 %v124
    %154 = vmatprep.subr.mxu0 0.0
    %155 = vmatpush1.msra.mxu0 %v125
    %156 = vmatprep.subr.mxu0 0.0
    %157 = vmatpush1.msra.mxu0 %v126
    %158 = vmatprep.subr.mxu0 0.0
    %159 = vmatpush1.msra.mxu0 %v127
    %160 = vmatprep.subr.mxu0 0.0
    %161 = vmatpush1.msra.mxu0 %v128
    %162 = vmatprep.subr.mxu0 0.0
    %163 = vmatpush1.msra.mxu0 %v129
    %164 = vmatprep.subr.mxu0 0.0
    %165 = vmatpush1.msra.mxu0 %v130
    %166 = vmatprep.subr.mxu0 0.0
    %167 = vmatpush1.msra.mxu0 %v131
    %168 = vmatprep.subr.mxu0 0.0
    %169 = vmatpush1.msra.mxu0 %v132
    %170 = vmatprep.subr.mxu0 0.0
    %171 = vmatpush1.msra.mxu0 %v133
    %172 = vmatprep.subr.mxu0 0.0
    %173 = vmatpush1.msra.mxu0 %v134
    %174 = vmatprep.subr.mxu0 0.0
    %175 = vmatpush1.msra.mxu0 0.0
    %176 = vmatprep.subr.mxu0 0.0
    %177 = vmatpush1.msra.mxu0 0.0
    %178 = vmatprep.subr.mxu0 0.0
    %179 = vmatpush1.msra.mxu0 0.0
    %180 = vmatprep.subr.mxu0 0.0
    %181 = vmatpush1.msra.mxu0 0.0
    %182 = vmatprep.subr.mxu0 0.0
    %183 = vmatpush1.msra.mxu0 0.0
    %184 = vmatprep.subr.mxu0 0.0
    %185 = vmatpush1.msra.mxu0 0.0
    %186 = vmatprep.subr.mxu0 0.0
    %187 = vmatpush1.msra.mxu0 0.0
    %188 = vmatprep.subr.mxu0 0.0
    %189 = vmatpush1.msra.mxu0 0.0
    %190 = vmatprep.subr.mxu0 0.0
    %191 = vmatpush1.msra.mxu0 0.0
    %192 = vmatprep.subr.mxu0 0.0
    %193 = vmatpush1.msra.mxu0 0.0
    %194 = vmatprep.subr.mxu0 0.0
    %195 = vmatpush1.msra.mxu0 0.0
    %196 = vmatprep.subr.mxu0 0.0
    %197 = vmatpush1.msra.mxu0 0.0
    %198 = vmatprep.subr.mxu0 0.0
    %199 = vmatpush1.msra.mxu0 0.0
    %200 = vmatprep.subr.mxu0 0.0
    %201 = vmatpush1.msra.mxu0 0.0
    %202 = vmatprep.subr.mxu0 0.0
    %203 = vmatpush1.msra.mxu0 0.0
    %204 = vmatprep.subr.mxu0 0.0
    %205 = vmatpush1.msra.mxu0 0.0
    %206 = vmatprep.mubr.f32.mxu0 0.0
    %207 = vmatmul.mubr.f32.gmra.mrb[0].mxu0 %v118
    %v208 = vpop.f32.mrb[0].mxu0
    %v209 = vadd.f32 %v140, %v208
    %v210 = vpop.f32.mrb[0].mxu0
    %211 = vdwg.mxu0
    %v212 = vlaneseq
    %v213 = vand.u32 %v212, 127
    %vm214 = vcmp.ge.s32.totalorder %v213, 1
    %vm215 = vcmp.le.s32.totalorder %v213, 8
    %vm216 = vmand %vm214, %vm215
    %v217 = vsel %vm216, %v209, -inf
    %218 = vmax.xlane.f32.xlu0 %v217
    %v219 = vpop.xlane.xlu0 %218
    %v220 = vsub.f32 %v217, %v219
    %v221 = vmul.f32 %v220, 1.442695
    %v222 = vpow.pop %v221
    %223 = vadd.xlane.f32.xlu0 %v222
    %v224 = vpop.xlane.xlu0 %223
    %v225 = vrcp.pop %v224
    %v226 = vmul.f32 %v222, %v225
    %vm227 = vcmp.eq.s32.totalorder %v213, 0
    %v228 = vsel %vm227, %v209, %v226
    %229 = vst [vmem:[%s5] sm:$0xff] %v228
    // Predicated region
    $region26: #{actor_critic_forward.1} parent=1 // pred_check
      _
    $region27: #{actor_critic_forward.1} parent=1 // pred_check_branch
      %231 = sbr.rel (0) target = $region29
    $region28: #{actor_critic_forward.1} parent=1 // pred_region
      _
    $region29: #{actor_critic_forward.1} parent=1 // pred_fallthru
      _
    // Predicated region
    $region30: #{actor_critic_forward.1} parent=1 // pred_check
      _
    $region31: #{actor_critic_forward.1} parent=1 // pred_check_branch
      %233 = sbr.rel (0) target = $region33
    $region32: #{actor_critic_forward.1} parent=1 // pred_region
      _
    $region33: #{actor_critic_forward.1} parent=1 // pred_fallthru
      _
    %234 = vsyncpa [#allocation3], 1

</llo_original>
